<compile_context>
chip_gen: v7x
topology: tpu7x:2x2x1
jax: 0.10.0
libtpu: 0.0.40
codegen_flags: <defaults>
</compile_context>

<pallas_src>
import math

import jax
import jax.numpy as jnp
from jax.experimental import pallas as pl
from jax.experimental.pallas import tpu as pltpu

# get_atom_feature_dims() from ogb.utils.features
FULL_ATOM_FEATURE_DIMS = [119, 5, 12, 12, 10, 6, 6, 2, 2]

_LANES = 128          # vreg lane width / MXU K per slab / output lane quantum
_SUB_ROWS = 128       # rows processed per inner step (bounds vreg pressure)
_NUM_FEAT = len(FULL_ATOM_FEATURE_DIMS)

# Static slab layout, baked into the kernel as Python constants.
_SLAB0_DIM = FULL_ATOM_FEATURE_DIMS[0]
_SLAB1_OFFSETS = []
_off = 0
for _d in FULL_ATOM_FEATURE_DIMS[1:]:
    _SLAB1_OFFSETS.append(_off)
    _off += _d
_SLAB1_DIM = _off
assert _SLAB0_DIM <= _LANES and _SLAB1_DIM <= _LANES


def _round_up(x, m):
    return ((x + m - 1) // m) * m


def atom_encoder_kernel(x_ref, tbl_ref, o_ref):
    # x_ref:   (tm, 9)        int32 raw feature indices
    # tbl_ref: (256, D_pad)   f32 slab-packed embedding tables (resident)
    # o_ref:   (tm, D_pad)    f32
    tm = o_ref.shape[0]
    n_sub = tm // _SUB_ROWS

    # Lane iota hoisted out of the row loop (JAX does not CSE broadcasts).
    lane = jax.lax.broadcasted_iota(jnp.int32, (_SUB_ROWS, _LANES), 1)

    def body(s, carry):
        r0 = pl.multiple_of(s * _SUB_ROWS, _SUB_ROWS)
        x = x_ref[pl.ds(r0, _SUB_ROWS), :]                 # (SUB, 9) int32

        # Slab 0: feature 0 alone -> plain one-hot, K=128 matmul.
        oh0 = (lane == x[:, 0:1]).astype(jnp.float32)
        acc = jnp.dot(oh0, tbl_ref[0:_LANES, :],
                      preferred_element_type=jnp.float32)

        # Slab 1: features 1..8 occupy disjoint static index ranges, so the
        # per-feature one-hots are OR-combined as booleans and cast to f32
        # exactly once.  (Out-of-range inputs are undefined, as in PyTorch.)
        hit = lane == (x[:, 1:2] + _SLAB1_OFFSETS[0])
        for i in range(1, _NUM_FEAT - 1):                  # static 7-way unroll
            hit = jnp.logical_or(
                hit, lane == (x[:, i + 1:i + 2] + _SLAB1_OFFSETS[i]))
        acc = acc + jnp.dot(hit.astype(jnp.float32),
                            tbl_ref[_LANES:2 * _LANES, :],
                            preferred_element_type=jnp.float32)

        o_ref[pl.ds(r0, _SUB_ROWS), :] = acc
        return carry

    jax.lax.fori_loop(0, n_sub, body, 0, unroll=True)


def atom_encoder2(x_idx, packed_table, emb_dim, *, tm=256):
    """x_idx: [N, 9] integer feature indices; returns [N, emb_dim] f32."""
    n, f = x_idx.shape
    assert f == _NUM_FEAT
    v_pad, d_pad = packed_table.shape
    assert v_pad == 2 * _LANES and d_pad % _LANES == 0

    # Row tile: multiple of the 128-row sub-block; shrink on small inputs so
    # the parallel grid keeps >= 2 steps (v7x has 2 TensorCores).
    tm = max(_SUB_ROWS, _round_up(min(tm, _round_up(n, _SUB_ROWS)), _SUB_ROWS))
    while tm > _SUB_ROWS and _round_up(n, tm) // tm < 2:
        tm = max(_SUB_ROWS, (tm // 2) // _SUB_ROWS * _SUB_ROWS)
    n_pad = _round_up(n, tm)

    x32 = x_idx.astype(jnp.int32)
    if n_pad != n:
        # Padded rows look up index 0 (valid for every feature); sliced off below.
        x32 = jnp.pad(x32, ((0, n_pad - n), (0, 0)))

    out = pl.pallas_call(
        atom_encoder_kernel,
        out_shape=jax.ShapeDtypeStruct((n_pad, d_pad), jnp.float32),
        grid_spec=pltpu.PrefetchScalarGridSpec(
            num_scalar_prefetch=0,
            grid=(n_pad // tm,),
            in_specs=[
                pl.BlockSpec((tm, f), lambda i: (i, 0)),              # indices
                pl.BlockSpec((2 * _LANES, d_pad), lambda i: (0, 0)),  # table
            ],
            out_specs=pl.BlockSpec((tm, d_pad), lambda i: (i, 0)),
        ),
        compiler_params=pltpu.CompilerParams(
            dimension_semantics=("parallel",)),
    )(x32, packed_table)

    out = out[:n]
    if d_pad != emb_dim:
        out = out[:, :emb_dim]
    return out


def init_atom_encoder_params(emb_dim, key):
    """Xavier-uniform init of each per-feature embedding table."""
    tables = []
    for dim in FULL_ATOM_FEATURE_DIMS:
        key, sub = jax.random.split(key)
        limit = math.sqrt(6.0 / (dim + emb_dim))
        tables.append(jax.random.uniform(sub, (dim, emb_dim), jnp.float32,
                                         -limit, limit))
    return tables


def pack_tables(tables):
    """Pack the 9 tables into a lane-dense [256, round_up(D,128)] f32 table."""
    emb_dim = tables[0].shape[1]
    d_pad = _round_up(emb_dim, _LANES)
    packed = jnp.zeros((2 * _LANES, d_pad), jnp.float32)
    packed = packed.at[:tables[0].shape[0], :emb_dim].set(tables[0])   # slab 0
    for t, local in zip(tables[1:], _SLAB1_OFFSETS):                   # slab 1
        packed = packed.at[_LANES + local:_LANES + local + t.shape[0],
                           :emb_dim].set(t)
    return packed


def reference_forward(x_idx, tables):
    out = 0
    for i in range(x_idx.shape[1]):
        out = out + tables[i][x_idx[:, i]]
    return out


if __name__ == "__main__":
    emb_dim = 128      # lane-dense output; wrapper slices if not a 128 multiple
    n_nodes = 200      # exercises row padding (200 -> 256) and tm adaptation

    key = jax.random.PRNGKey(0)
    pkey, xkey = jax.random.split(key)

    tables = init_atom_encoder_params(emb_dim, pkey)
    packed_table = pack_tables(tables)

    # Deterministic integer inputs, each column within its feature cardinality.
    cols = []
    for dim in FULL_ATOM_FEATURE_DIMS:
        xkey, sub = jax.random.split(xkey)
        cols.append(jax.random.randint(sub, (n_nodes, 1), 0, dim, jnp.int32))
    x_idx = jnp.concatenate(cols, axis=1)          # [N, 9] int32

    out = atom_encoder2(x_idx, packed_table, emb_dim)
    out = jax.block_until_ready(out)

    ref = reference_forward(x_idx, tables)
    assert out.shape == (n_nodes, emb_dim)
    assert jnp.allclose(out, ref, atol=1e-5, rtol=1e-5), "mismatch vs reference"

    print("KERNEL_OK")
</pallas_src>

<mosaic_0001>
module attributes {stable_mosaic.version = 11 : i64} {
  func.func @atom_encoder_kernel(%arg0: i32, %arg1: memref<128x9xi32, #tpu.memory_space<vmem>>, %arg2: memref<256x128xf32, #tpu.memory_space<vmem>>, %arg3: memref<128x128xf32, #tpu.memory_space<vmem>>) attributes {dimension_semantics = [#tpu.dimension_semantics<parallel>], iteration_bounds = array<i64: 2>, scalar_prefetch = 0 : i64, scratch_operands = 0 : i64, tpu.core_type = #tpu.core_type<tc>, window_params = [{transform_indices = @transform_0, window_bounds = array<i64: 128, 9>}, {pipeline_mode = #tpu.pipeline_mode<synchronous>, transform_indices = @transform_1, window_bounds = array<i64: 256, 128>}, {transform_indices = @transform_2, window_bounds = array<i64: 128, 128>}]} {
    %0 = tpu.iota {dimensions = array<i32: 1>} : vector<128x128xi32>
    %c0_i32 = arith.constant 0 : i32
    %c128_i32 = arith.constant 128 : i32
    %1 = arith.muli %c0_i32, %c128_i32 : i32
    %2 = tpu.assume_multiple %1, 128 : i32
    %3 = arith.index_cast %2 : i32 to index
    %c0 = arith.constant 0 : index
    %4 = vector.load %arg1[%3, %c0] : memref<128x9xi32, #tpu.memory_space<vmem>>, vector<128x9xi32>
    %5 = vector.extract_strided_slice %4 {offsets = [0, 0], sizes = [128, 1], strides = [1, 1]} : vector<128x9xi32> to vector<128x1xi32>
    %6 = vector.broadcast %5 : vector<128x1xi32> to vector<128x128xi32>
    %7 = arith.cmpi eq, %0, %6 : vector<128x128xi32>
    %8 = arith.extui %7 : vector<128x128xi1> to vector<128x128xi32>
    %9 = arith.sitofp %8 : vector<128x128xi32> to vector<128x128xf32>
    %c0_0 = arith.constant 0 : index
    %c0_1 = arith.constant 0 : index
    %10 = vector.load %arg2[%c0_0, %c0_1] : memref<256x128xf32, #tpu.memory_space<vmem>>, vector<128x128xf32>
    %cst = arith.constant dense<0.000000e+00> : vector<128x128xf32>
    %11 = tpu.matmul %9, %10, %cst {dimension_numbers = #tpu.dot_dimension_numbers<[1], [0], [0], [1], [0, 0, 1, 1], [], []>} : vector<128x128xf32>, vector<128x128xf32>, vector<128x128xf32> -> vector<128x128xf32>
    %12 = vector.extract_strided_slice %4 {offsets = [0, 1], sizes = [128, 1], strides = [1, 1]} : vector<128x9xi32> to vector<128x1xi32>
    %c0_i32_2 = arith.constant 0 : i32
    %13 = vector.broadcast %c0_i32_2 : i32 to vector<128x1xi32>
    %14 = arith.addi %12, %13 : vector<128x1xi32>
    %15 = vector.broadcast %14 : vector<128x1xi32> to vector<128x128xi32>
    %16 = arith.cmpi eq, %0, %15 : vector<128x128xi32>
    %17 = vector.extract_strided_slice %4 {offsets = [0, 2], sizes = [128, 1], strides = [1, 1]} : vector<128x9xi32> to vector<128x1xi32>
    %c5_i32 = arith.constant 5 : i32
    %18 = vector.broadcast %c5_i32 : i32 to vector<128x1xi32>
    %19 = arith.addi %17, %18 : vector<128x1xi32>
    %20 = vector.broadcast %19 : vector<128x1xi32> to vector<128x128xi32>
    %21 = arith.cmpi eq, %0, %20 : vector<128x128xi32>
    %22 = arith.ori %16, %21 : vector<128x128xi1>
    %23 = vector.extract_strided_slice %4 {offsets = [0, 3], sizes = [128, 1], strides = [1, 1]} : vector<128x9xi32> to vector<128x1xi32>
    %c17_i32 = arith.constant 17 : i32
    %24 = vector.broadcast %c17_i32 : i32 to vector<128x1xi32>
    %25 = arith.addi %23, %24 : vector<128x1xi32>
    %26 = vector.broadcast %25 : vector<128x1xi32> to vector<128x128xi32>
    %27 = arith.cmpi eq, %0, %26 : vector<128x128xi32>
    %28 = arith.ori %22, %27 : vector<128x128xi1>
    %29 = vector.extract_strided_slice %4 {offsets = [0, 4], sizes = [128, 1], strides = [1, 1]} : vector<128x9xi32> to vector<128x1xi32>
    %c29_i32 = arith.constant 29 : i32
    %30 = vector.broadcast %c29_i32 : i32 to vector<128x1xi32>
    %31 = arith.addi %29, %30 : vector<128x1xi32>
    %32 = vector.broadcast %31 : vector<128x1xi32> to vector<128x128xi32>
    %33 = arith.cmpi eq, %0, %32 : vector<128x128xi32>
    %34 = arith.ori %28, %33 : vector<128x128xi1>
    %35 = vector.extract_strided_slice %4 {offsets = [0, 5], sizes = [128, 1], strides = [1, 1]} : vector<128x9xi32> to vector<128x1xi32>
    %c39_i32 = arith.constant 39 : i32
    %36 = vector.broadcast %c39_i32 : i32 to vector<128x1xi32>
    %37 = arith.addi %35, %36 : vector<128x1xi32>
    %38 = vector.broadcast %37 : vector<128x1xi32> to vector<128x128xi32>
    %39 = arith.cmpi eq, %0, %38 : vector<128x128xi32>
    %40 = arith.ori %34, %39 : vector<128x128xi1>
    %41 = vector.extract_strided_slice %4 {offsets = [0, 6], sizes = [128, 1], strides = [1, 1]} : vector<128x9xi32> to vector<128x1xi32>
    %c45_i32 = arith.constant 45 : i32
    %42 = vector.broadcast %c45_i32 : i32 to vector<128x1xi32>
    %43 = arith.addi %41, %42 : vector<128x1xi32>
    %44 = vector.broadcast %43 : vector<128x1xi32> to vector<128x128xi32>
    %45 = arith.cmpi eq, %0, %44 : vector<128x128xi32>
    %46 = arith.ori %40, %45 : vector<128x128xi1>
    %47 = vector.extract_strided_slice %4 {offsets = [0, 7], sizes = [128, 1], strides = [1, 1]} : vector<128x9xi32> to vector<128x1xi32>
    %c51_i32 = arith.constant 51 : i32
    %48 = vector.broadcast %c51_i32 : i32 to vector<128x1xi32>
    %49 = arith.addi %47, %48 : vector<128x1xi32>
    %50 = vector.broadcast %49 : vector<128x1xi32> to vector<128x128xi32>
    %51 = arith.cmpi eq, %0, %50 : vector<128x128xi32>
    %52 = arith.ori %46, %51 : vector<128x128xi1>
    %53 = vector.extract_strided_slice %4 {offsets = [0, 8], sizes = [128, 1], strides = [1, 1]} : vector<128x9xi32> to vector<128x1xi32>
    %c53_i32 = arith.constant 53 : i32
    %54 = vector.broadcast %c53_i32 : i32 to vector<128x1xi32>
    %55 = arith.addi %53, %54 : vector<128x1xi32>
    %56 = vector.broadcast %55 : vector<128x1xi32> to vector<128x128xi32>
    %57 = arith.cmpi eq, %0, %56 : vector<128x128xi32>
    %58 = arith.ori %52, %57 : vector<128x128xi1>
    %59 = arith.extui %58 : vector<128x128xi1> to vector<128x128xi32>
    %60 = arith.sitofp %59 : vector<128x128xi32> to vector<128x128xf32>
    %c128 = arith.constant 128 : index
    %c0_3 = arith.constant 0 : index
    %61 = vector.load %arg2[%c128, %c0_3] : memref<256x128xf32, #tpu.memory_space<vmem>>, vector<128x128xf32>
    %cst_4 = arith.constant dense<0.000000e+00> : vector<128x128xf32>
    %62 = tpu.matmul %60, %61, %cst_4 {dimension_numbers = #tpu.dot_dimension_numbers<[1], [0], [0], [1], [0, 0, 1, 1], [], []>} : vector<128x128xf32>, vector<128x128xf32>, vector<128x128xf32> -> vector<128x128xf32>
    %63 = arith.addf %11, %62 : vector<128x128xf32>
    %64 = arith.index_cast %2 : i32 to index
    %c0_5 = arith.constant 0 : index
    %65 = vector.load %arg3[%64, %c0_5] : memref<128x128xf32, #tpu.memory_space<vmem>>, vector<128x128xf32>
    tpu.vector_store %arg3[%64, %c0_5], %63 {strides = array<i32>} : memref<128x128xf32, #tpu.memory_space<vmem>>, vector<128x128xf32>,
    %c1_i32 = arith.constant 1 : i32
    return
  }
  func.func @transform_0(%arg0: i32) -> (i32, i32) {
    %c0_i32 = arith.constant 0 : i32
    %c0_i32_0 = arith.constant 0 : i32
    return %arg0, %c0_i32 : i32, i32
  }
  func.func @transform_1(%arg0: i32) -> (i32, i32) {
    %c0_i32 = arith.constant 0 : i32
    %c0_i32_0 = arith.constant 0 : i32
    %c0_i32_1 = arith.constant 0 : i32
    return %c0_i32, %c0_i32_0 : i32, i32
  }
  func.func @transform_2(%arg0: i32) -> (i32, i32) {
    %c0_i32 = arith.constant 0 : i32
    %c0_i32_0 = arith.constant 0 : i32
    return %arg0, %c0_i32 : i32, i32
  }
}

</mosaic_0001>

<llo_original>
// kernel: tpu_custom_call.1
$region0: #{tpu_custom_call.1}
  #allocation0 [shape = 'u32[]', space=smem, size = 0x4, offset = 0x4, fixed_abs, tag = 'smem constant byte address 0x4 - core index']
  #allocation1 [shape = 'u32[144,128]{1,0:T(1,128)}', space=vmem, size = 0x12000, scoped, tag = 'internal scratch']
  %s0 = inlined_call_operand.vmem [shape: s32[256,9], index: 0, kind: input, shape index: {}]
  %s1 = inlined_call_operand.vmem [shape: f32[256,128], index: 1, kind: input, shape index: {}]
  %s2 = inlined_call_operand.hbm [shape: f32[256,128], index: 2, kind: output, shape index: {}]
  %s3 = sld [smem:[#allocation0]]
  $region41: #{tpu_custom_call.1} parent=0
    _
  %s5 = ssub.s32 1, %s3
  %s6 = scalar_select 0, %s5, %s3
  $region1: #{tpu_custom_call.1} parent=0
    #allocation2 [shape = 'u8[131072]{0}', space=vmem, size = 0x20000, scoped, tag = 'output window, operand 0']
    #allocation3 [shape = 's32[2]{0}', space=sflag, size = 0x8, scoped, tag = 'scoped memory for tpu_custom_call.1']
    %7 = vsyncpa [#allocation3], 0
    %s8 = scalar_lea.sflag [#allocation3], 1
    %9 = vsyncpa %s8, 0
    loop: start=0, step=1, limit=4
    $region2: #{tpu_custom_call.1} parent=1 // loop_pre_header
      _
    $region3: #{tpu_custom_call.1} parent=1 // loop_header
      %s11 = sphi 0, %s15
      %p12 = scmp.ge.s32.totalorder %s11, 4
      %s21 = sphi 0, %s23
      %s24 = sphi 0, %s21
      %s25 = sphi 0, %s24
      %s41 = sphi 0, %s25
      %s45 = sphi 0, %s45
      %s47 = sphi 0, %s45
      %s48 = sphi 0, %s47
      %s62 = sphi 0, %s48
      %s68 = sphi 0, %s70
      %s71 = sphi 0, %s68
      %s72 = sphi 0, %s71
      %s88 = sphi 0, %s72
    $region4: #{tpu_custom_call.1} parent=1 // loop_header_branch
      %14 = sbr.rel (%p12) target = $region8
    $region5: #{tpu_custom_call.1} parent=1 // loop_body
      %s16 = ssub.s32 %s11, 1
      %s17 = ssub.s32 %s11, 2
      %s18 = sadd.s32 %s11, 1
      %s19 = ssub.s32 %s11, %s18
      %p20 = scmp.eq.s32.totalorder %s19, 0
      %s22 = sadd.s32 %s21, 1
      %s23 = scalar_select %p20, %s21, %s22
      %p26 = pneg %p20
      %p27 = scmp.eq.s32.totalorder %s11, 1
      %p28 = por %p26, %p27
      %p29 = scmp.ne.s32.totalorder %s21, %s24
      %p30 = scmp.eq.s32.totalorder %s11, 0
      %p31 = por %p29, %p30
      %p32 = scmp.ne.s32.totalorder %s21, %s24
      %p33 = scmp.eq.s32.totalorder %s16, 1
      %p34 = por %p32, %p33
      %p35 = scmp.ne.s32.totalorder %s24, %s25
      %p36 = scmp.eq.s32.totalorder %s16, 0
      %p37 = por %p35, %p36
      %p38 = scmp.ne.s32.totalorder %s24, %s25
      %p39 = scmp.eq.s32.totalorder %s17, 1
      %p40 = por %p38, %p39
      %p42 = scmp.ne.s32.totalorder %s25, %s41
      %p43 = scmp.eq.s32.totalorder %s17, 0
      %p44 = por %p42, %p43
      %s46 = sadd.s32 %s45, 1
      %p49 = scmp.eq.s32.totalorder %s11, 1
      %p50 = scmp.ne.s32.totalorder %s45, %s47
      %p51 = scmp.eq.s32.totalorder %s11, 0
      %p52 = por %p50, %p51
      %p53 = scmp.ne.s32.totalorder %s45, %s47
      %p54 = scmp.eq.s32.totalorder %s16, 1
      %p55 = por %p53, %p54
      %p56 = scmp.ne.s32.totalorder %s47, %s48
      %p57 = scmp.eq.s32.totalorder %s16, 0
      %p58 = por %p56, %p57
      %p59 = scmp.ne.s32.totalorder %s47, %s48
      %p60 = scmp.eq.s32.totalorder %s17, 1
      %p61 = por %p59, %p60
      %p63 = scmp.ne.s32.totalorder %s48, %s62
      %p64 = scmp.eq.s32.totalorder %s17, 0
      %p65 = por %p63, %p64
      %s66 = ssub.s32 %s11, %s18
      %p67 = scmp.eq.s32.totalorder %s66, 0
      %s69 = sadd.s32 %s68, 1
      %s70 = scalar_select %p67, %s68, %s69
      %p73 = pneg %p67
      %p74 = scmp.eq.s32.totalorder %s11, 1
      %p75 = por %p73, %p74
      %p76 = scmp.ne.s32.totalorder %s68, %s71
      %p77 = scmp.eq.s32.totalorder %s11, 0
      %p78 = por %p76, %p77
      %p79 = scmp.ne.s32.totalorder %s68, %s71
      %p80 = scmp.eq.s32.totalorder %s16, 1
      %p81 = por %p79, %p80
      %p82 = scmp.ne.s32.totalorder %s71, %s72
      %p83 = scmp.eq.s32.totalorder %s16, 0
      %p84 = por %p82, %p83
      %p85 = scmp.ne.s32.totalorder %s71, %s72
      %p86 = scmp.eq.s32.totalorder %s17, 1
      %p87 = por %p85, %p86
      %p89 = scmp.ne.s32.totalorder %s72, %s88
      %p90 = scmp.eq.s32.totalorder %s17, 0
      %p91 = por %p89, %p90
      %p92 = scmp.le.s32.totalorder 1, %s11
      %p93 = scmp.lt.s32.totalorder %s11, 3
      %p94 = pnand %p92, %p93
      %p95 = pneg %p94
      // Predicated region
      $region9: #{tpu_custom_call.1} parent=5 // pred_check
        _
      $region10: #{tpu_custom_call.1} parent=5 // pred_check_branch
        %97 = sbr.rel (%p94) target = $region12
      $region11: #{tpu_custom_call.1} parent=5 // pred_region
        %s98 = ssub.s32 %s11, 1
        // Predicated region
        $region13: #{tpu_custom_call.1} parent=11 // pred_check
          %p99 = pneg %p58
        $region14: #{tpu_custom_call.1} parent=11 // pred_check_branch
          %101 = sbr.rel (%p99) target = $region16
        $region15: #{tpu_custom_call.1} parent=11 // pred_region
          _
        $region16: #{tpu_custom_call.1} parent=11 // pred_fallthru
          _
      $region12: #{tpu_custom_call.1} parent=5 // pred_fallthru
        _
      %p102 = scmp.lt.s32.totalorder %s11, 2
      // Predicated region
      $region17: #{tpu_custom_call.1} parent=5 // pred_check
        %p103 = pneg %p102
      $region18: #{tpu_custom_call.1} parent=5 // pred_check_branch
        %105 = sbr.rel (%p103) target = $region20
      $region19: #{tpu_custom_call.1} parent=5 // pred_region
        // Predicated region
        $region21: #{tpu_custom_call.1} parent=19 // pred_check
          %p106 = pneg %p31
        $region22: #{tpu_custom_call.1} parent=19 // pred_check_branch
          %108 = sbr.rel (%p106) target = $region24
        $region23: #{tpu_custom_call.1} parent=19 // pred_region
          %s109 = smul.u32 16, %s11
          %p110 = scmp.lt.s32.totalorder %s109, 31
          %s111 = scalar_select %p110, %s109, 31
          %s112 = smul.addr %s111, 8
          %s113 = scalar_lea.vmem %s0, %s112
          %s114 = smul.u32 16, %s11
        $region24: #{tpu_custom_call.1} parent=19 // pred_fallthru
          _
      $region20: #{tpu_custom_call.1} parent=5 // pred_fallthru
        _
      %p115 = scmp.le.s32.totalorder 1, %s11
      %p116 = scmp.lt.s32.totalorder %s11, 3
      %p117 = pnand %p115, %p116
      %p118 = pneg %p117
      // Predicated region
      $region25: #{tpu_custom_call.1} parent=5 // pred_check
        _
      $region26: #{tpu_custom_call.1} parent=5 // pred_check_branch
        %120 = sbr.rel (%p117) target = $region28
      $region27: #{tpu_custom_call.1} parent=5 // pred_region
        %s121 = ssub.s32 %s11, 1
        %s122 = smul.u32 16, %s16
        %p123 = scmp.lt.s32.totalorder %s122, 31
        %s124 = scalar_select %p123, %s122, 31
        %s125 = smul.addr %s124, 8
        %s126 = scalar_lea.vmem %s0, %s125
        %p127 = pneg %p37
        %p128 = pneg %p34
        %p129 = pneg %p58
        %p130 = pneg %p55
        %p131 = pneg %p84
        %p132 = pneg %p81
        %s133 = sand.u32 %s71, 1
        %s134 = scalar_lea.sflag [#allocation3], %s133
        %s135 = sand.u32 %s71, 1
        %s136 = smul.addr %s135, 128
        %s137 = scalar_lea.vmem [#allocation2], %s136
        %s138 = smul.u32 16, %s16
        %p139 = scmp.lt.s32.totalorder %s138, 31
        %s140 = scalar_select %p139, %s138, 31
        %s141 = smul.addr %s140, 8
        %s142 = scalar_lea.vmem %s0, %s141
        %s143 = smul.u32 16, %s16
        %s144 = smul.u32 16, %s16
        %v145 = vlaneseq
        %v146 = vand.u32 %v145, 127
        %v147 = vld [vmem:[%s142] sm:$0xff]
        %v148 = vld [vmem:[%s142 + $0x8] sm:$0xff]
        %v149 = vld [vmem:[%s142 + $0x10] sm:$0xff]
        %v150 = vld [vmem:[%s142 + $0x18] sm:$0xff]
        %v151 = vld [vmem:[%s142 + $0x20] sm:$0xff]
        %v152 = vld [vmem:[%s142 + $0x28] sm:$0xff]
        %v153 = vld [vmem:[%s142 + $0x30] sm:$0xff]
        %v154 = vld [vmem:[%s142 + $0x38] sm:$0xff]
        %v155 = vld [vmem:[%s142 + $0x40] sm:$0xff]
        %v156 = vld [vmem:[%s142 + $0x48] sm:$0xff]
        %v157 = vld [vmem:[%s142 + $0x50] sm:$0xff]
        %v158 = vld [vmem:[%s142 + $0x58] sm:$0xff]
        %v159 = vld [vmem:[%s142 + $0x60] sm:$0xff]
        %v160 = vld [vmem:[%s142 + $0x68] sm:$0xff]
        %v161 = vld [vmem:[%s142 + $0x70] sm:$0xff]
        %v162 = vld [vmem:[%s142 + $0x78] sm:$0xff]
        %163 = vset.pattern.permute.xlu0 0
        %164 = vperm.xlu0 %163, %v147
        %v165 = vpop.permute.xlu0 %164
        %166 = vset.pattern.permute.xlu0 0
        %167 = vperm.xlu0 %166, %v148
        %v168 = vpop.permute.xlu0 %167
        %169 = vset.pattern.permute.xlu0 0
        %170 = vperm.xlu0 %169, %v149
        %v171 = vpop.permute.xlu0 %170
        %172 = vset.pattern.permute.xlu0 0
        %173 = vperm.xlu0 %172, %v150
        %v174 = vpop.permute.xlu0 %173
        %175 = vset.pattern.permute.xlu0 0
        %176 = vperm.xlu0 %175, %v151
        %v177 = vpop.permute.xlu0 %176
        %178 = vset.pattern.permute.xlu0 0
        %179 = vperm.xlu0 %178, %v152
        %v180 = vpop.permute.xlu0 %179
        %181 = vset.pattern.permute.xlu0 0
        %182 = vperm.xlu0 %181, %v153
        %v183 = vpop.permute.xlu0 %182
        %184 = vset.pattern.permute.xlu0 0
        %185 = vperm.xlu0 %184, %v154
        %v186 = vpop.permute.xlu0 %185
        %187 = vset.pattern.permute.xlu0 0
        %188 = vperm.xlu0 %187, %v155
        %v189 = vpop.permute.xlu0 %188
        %190 = vset.pattern.permute.xlu0 0
        %191 = vperm.xlu0 %190, %v156
        %v192 = vpop.permute.xlu0 %191
        %193 = vset.pattern.permute.xlu0 0
        %194 = vperm.xlu0 %193, %v157
        %v195 = vpop.permute.xlu0 %194
        %196 = vset.pattern.permute.xlu0 0
        %197 = vperm.xlu0 %196, %v158
        %v198 = vpop.permute.xlu0 %197
        %199 = vset.pattern.permute.xlu0 0
        %200 = vperm.xlu0 %199, %v159
        %v201 = vpop.permute.xlu0 %200
        %202 = vset.pattern.permute.xlu0 0
        %203 = vperm.xlu0 %202, %v160
        %v204 = vpop.permute.xlu0 %203
        %205 = vset.pattern.permute.xlu0 0
        %206 = vperm.xlu0 %205, %v161
        %v207 = vpop.permute.xlu0 %206
        %208 = vset.pattern.permute.xlu0 0
        %209 = vperm.xlu0 %208, %v162
        %v210 = vpop.permute.xlu0 %209
        %vm211 = vcmp.eq.s32.totalorder %v146, %v165
        %vm212 = vcmp.eq.s32.totalorder %v146, %v168
        %vm213 = vcmp.eq.s32.totalorder %v146, %v171
        %vm214 = vcmp.eq.s32.totalorder %v146, %v174
        %vm215 = vcmp.eq.s32.totalorder %v146, %v177
        %vm216 = vcmp.eq.s32.totalorder %v146, %v180
        %vm217 = vcmp.eq.s32.totalorder %v146, %v183
        %vm218 = vcmp.eq.s32.totalorder %v146, %v186
        %vm219 = vcmp.eq.s32.totalorder %v146, %v189
        %vm220 = vcmp.eq.s32.totalorder %v146, %v192
        %vm221 = vcmp.eq.s32.totalorder %v146, %v195
        %vm222 = vcmp.eq.s32.totalorder %v146, %v198
        %vm223 = vcmp.eq.s32.totalorder %v146, %v201
        %vm224 = vcmp.eq.s32.totalorder %v146, %v204
        %vm225 = vcmp.eq.s32.totalorder %v146, %v207
        %vm226 = vcmp.eq.s32.totalorder %v146, %v210
        %v227 = vsel %vm211, 1, 0
        %v228 = vsel %vm212, 1, 0
        %v229 = vsel %vm213, 1, 0
        %v230 = vsel %vm214, 1, 0
        %v231 = vsel %vm215, 1, 0
        %v232 = vsel %vm216, 1, 0
        %v233 = vsel %vm217, 1, 0
        %v234 = vsel %vm218, 1, 0
        %v235 = vsel %vm219, 1, 0
        %v236 = vsel %vm220, 1, 0
        %v237 = vsel %vm221, 1, 0
        %v238 = vsel %vm222, 1, 0
        %v239 = vsel %vm223, 1, 0
        %v240 = vsel %vm224, 1, 0
        %v241 = vsel %vm225, 1, 0
        %v242 = vsel %vm226, 1, 0
        %v243 = vcvt.s32.f32 %v227
        %v244 = vcvt.s32.f32 %v228
        %v245 = vcvt.s32.f32 %v229
        %v246 = vcvt.s32.f32 %v230
        %v247 = vcvt.s32.f32 %v231
        %v248 = vcvt.s32.f32 %v232
        %v249 = vcvt.s32.f32 %v233
        %v250 = vcvt.s32.f32 %v234
        %v251 = vcvt.s32.f32 %v235
        %v252 = vcvt.s32.f32 %v236
        %v253 = vcvt.s32.f32 %v237
        %v254 = vcvt.s32.f32 %v238
        %v255 = vcvt.s32.f32 %v239
        %v256 = vcvt.s32.f32 %v240
        %v257 = vcvt.s32.f32 %v241
        %v258 = vcvt.s32.f32 %v242
        %v259 = vld [vmem:[%s1] sm:$0xff]
        %v260 = vld [vmem:[%s1 + $0x8] sm:$0xff]
        %v261 = vld [vmem:[%s1 + $0x10] sm:$0xff]
        %v262 = vld [vmem:[%s1 + $0x18] sm:$0xff]
        %v263 = vld [vmem:[%s1 + $0x20] sm:$0xff]
        %v264 = vld [vmem:[%s1 + $0x28] sm:$0xff]
        %v265 = vld [vmem:[%s1 + $0x30] sm:$0xff]
        %v266 = vld [vmem:[%s1 + $0x38] sm:$0xff]
        %v267 = vld [vmem:[%s1 + $0x40] sm:$0xff]
        %v268 = vld [vmem:[%s1 + $0x48] sm:$0xff]
        %v269 = vld [vmem:[%s1 + $0x50] sm:$0xff]
        %v270 = vld [vmem:[%s1 + $0x58] sm:$0xff]
        %v271 = vld [vmem:[%s1 + $0x60] sm:$0xff]
        %v272 = vld [vmem:[%s1 + $0x68] sm:$0xff]
        %v273 = vld [vmem:[%s1 + $0x70] sm:$0xff]
        %v274 = vld [vmem:[%s1 + $0x78] sm:$0xff]
        %275 = vset.pattern.permute.xlu0 1
        %276 = vperm.xlu0 %275, %v147
        %v277 = vpop.permute.xlu0 %276
        %278 = vset.pattern.permute.xlu0 1
        %279 = vperm.xlu0 %278, %v148
        %v280 = vpop.permute.xlu0 %279
        %281 = vset.pattern.permute.xlu0 1
        %282 = vperm.xlu0 %281, %v149
        %v283 = vpop.permute.xlu0 %282
        %284 = vset.pattern.permute.xlu0 1
        %285 = vperm.xlu0 %284, %v150
        %v286 = vpop.permute.xlu0 %285
        %287 = vset.pattern.permute.xlu0 1
        %288 = vperm.xlu0 %287, %v151
        %v289 = vpop.permute.xlu0 %288
        %290 = vset.pattern.permute.xlu0 1
        %291 = vperm.xlu0 %290, %v152
        %v292 = vpop.permute.xlu0 %291
        %293 = vset.pattern.permute.xlu0 1
        %294 = vperm.xlu0 %293, %v153
        %v295 = vpop.permute.xlu0 %294
        %296 = vset.pattern.permute.xlu0 1
        %297 = vperm.xlu0 %296, %v154
        %v298 = vpop.permute.xlu0 %297
        %299 = vset.pattern.permute.xlu0 1
        %300 = vperm.xlu0 %299, %v155
        %v301 = vpop.permute.xlu0 %300
        %302 = vset.pattern.permute.xlu0 1
        %303 = vperm.xlu0 %302, %v156
        %v304 = vpop.permute.xlu0 %303
        %305 = vset.pattern.permute.xlu0 1
        %306 = vperm.xlu0 %305, %v157
        %v307 = vpop.permute.xlu0 %306
        %308 = vset.pattern.permute.xlu0 1
        %309 = vperm.xlu0 %308, %v158
        %v310 = vpop.permute.xlu0 %309
        %311 = vset.pattern.permute.xlu0 1
        %312 = vperm.xlu0 %311, %v159
        %v313 = vpop.permute.xlu0 %312
        %314 = vset.pattern.permute.xlu0 1
        %315 = vperm.xlu0 %314, %v160
        %v316 = vpop.permute.xlu0 %315
        %317 = vset.pattern.permute.xlu0 1
        %318 = vperm.xlu0 %317, %v161
        %v319 = vpop.permute.xlu0 %318
        %320 = vset.pattern.permute.xlu0 1
        %321 = vperm.xlu0 %320, %v162
        %v322 = vpop.permute.xlu0 %321
        %vm323 = vcmp.eq.s32.totalorder %v146, %v277
        %vm324 = vcmp.eq.s32.totalorder %v146, %v280
        %vm325 = vcmp.eq.s32.totalorder %v146, %v283
        %vm326 = vcmp.eq.s32.totalorder %v146, %v286
        %vm327 = vcmp.eq.s32.totalorder %v146, %v289
        %vm328 = vcmp.eq.s32.totalorder %v146, %v292
        %vm329 = vcmp.eq.s32.totalorder %v146, %v295
        %vm330 = vcmp.eq.s32.totalorder %v146, %v298
        %vm331 = vcmp.eq.s32.totalorder %v146, %v301
        %vm332 = vcmp.eq.s32.totalorder %v146, %v304
        %vm333 = vcmp.eq.s32.totalorder %v146, %v307
        %vm334 = vcmp.eq.s32.totalorder %v146, %v310
        %vm335 = vcmp.eq.s32.totalorder %v146, %v313
        %vm336 = vcmp.eq.s32.totalorder %v146, %v316
        %vm337 = vcmp.eq.s32.totalorder %v146, %v319
        %vm338 = vcmp.eq.s32.totalorder %v146, %v322
        %v339 = vadd.s32 %v147, 5
        %v340 = vadd.s32 %v148, 5
        %v341 = vadd.s32 %v149, 5
        %v342 = vadd.s32 %v150, 5
        %v343 = vadd.s32 %v151, 5
        %v344 = vadd.s32 %v152, 5
        %v345 = vadd.s32 %v153, 5
        %v346 = vadd.s32 %v154, 5
        %v347 = vadd.s32 %v155, 5
        %v348 = vadd.s32 %v156, 5
        %v349 = vadd.s32 %v157, 5
        %v350 = vadd.s32 %v158, 5
        %v351 = vadd.s32 %v159, 5
        %v352 = vadd.s32 %v160, 5
        %v353 = vadd.s32 %v161, 5
        %v354 = vadd.s32 %v162, 5
        %355 = vset.pattern.permute.xlu0 2
        %356 = vperm.xlu0 %355, %v339
        %v357 = vpop.permute.xlu0 %356
        %358 = vset.pattern.permute.xlu0 2
        %359 = vperm.xlu0 %358, %v340
        %v360 = vpop.permute.xlu0 %359
        %361 = vset.pattern.permute.xlu0 2
        %362 = vperm.xlu0 %361, %v341
        %v363 = vpop.permute.xlu0 %362
        %364 = vset.pattern.permute.xlu0 2
        %365 = vperm.xlu0 %364, %v342
        %v366 = vpop.permute.xlu0 %365
        %367 = vset.pattern.permute.xlu0 2
        %368 = vperm.xlu0 %367, %v343
        %v369 = vpop.permute.xlu0 %368
        %370 = vset.pattern.permute.xlu0 2
        %371 = vperm.xlu0 %370, %v344
        %v372 = vpop.permute.xlu0 %371
        %373 = vset.pattern.permute.xlu0 2
        %374 = vperm.xlu0 %373, %v345
        %v375 = vpop.permute.xlu0 %374
        %376 = vset.pattern.permute.xlu0 2
        %377 = vperm.xlu0 %376, %v346
        %v378 = vpop.permute.xlu0 %377
        %379 = vset.pattern.permute.xlu0 2
        %380 = vperm.xlu0 %379, %v347
        %v381 = vpop.permute.xlu0 %380
        %382 = vset.pattern.permute.xlu0 2
        %383 = vperm.xlu0 %382, %v348
        %v384 = vpop.permute.xlu0 %383
        %385 = vset.pattern.permute.xlu0 2
        %386 = vperm.xlu0 %385, %v349
        %v387 = vpop.permute.xlu0 %386
        %388 = vset.pattern.permute.xlu0 2
        %389 = vperm.xlu0 %388, %v350
        %v390 = vpop.permute.xlu0 %389
        %391 = vset.pattern.permute.xlu0 2
        %392 = vperm.xlu0 %391, %v351
        %v393 = vpop.permute.xlu0 %392
        %394 = vset.pattern.permute.xlu0 2
        %395 = vperm.xlu0 %394, %v352
        %v396 = vpop.permute.xlu0 %395
        %397 = vset.pattern.permute.xlu0 2
        %398 = vperm.xlu0 %397, %v353
        %v399 = vpop.permute.xlu0 %398
        %400 = vset.pattern.permute.xlu0 2
        %401 = vperm.xlu0 %400, %v354
        %v402 = vpop.permute.xlu0 %401
        %vm403 = vcmp.eq.s32.totalorder %v146, %v357
        %vm404 = vcmp.eq.s32.totalorder %v146, %v360
        %vm405 = vcmp.eq.s32.totalorder %v146, %v363
        %vm406 = vcmp.eq.s32.totalorder %v146, %v366
        %vm407 = vcmp.eq.s32.totalorder %v146, %v369
        %vm408 = vcmp.eq.s32.totalorder %v146, %v372
        %vm409 = vcmp.eq.s32.totalorder %v146, %v375
        %vm410 = vcmp.eq.s32.totalorder %v146, %v378
        %vm411 = vcmp.eq.s32.totalorder %v146, %v381
        %vm412 = vcmp.eq.s32.totalorder %v146, %v384
        %vm413 = vcmp.eq.s32.totalorder %v146, %v387
        %vm414 = vcmp.eq.s32.totalorder %v146, %v390
        %vm415 = vcmp.eq.s32.totalorder %v146, %v393
        %vm416 = vcmp.eq.s32.totalorder %v146, %v396
        %vm417 = vcmp.eq.s32.totalorder %v146, %v399
        %vm418 = vcmp.eq.s32.totalorder %v146, %v402
        %vm419 = vmor %vm323, %vm403
        %vm420 = vmor %vm324, %vm404
        %vm421 = vmor %vm325, %vm405
        %vm422 = vmor %vm326, %vm406
        %vm423 = vmor %vm327, %vm407
        %vm424 = vmor %vm328, %vm408
        %vm425 = vmor %vm329, %vm409
        %vm426 = vmor %vm330, %vm410
        %vm427 = vmor %vm331, %vm411
        %vm428 = vmor %vm332, %vm412
        %vm429 = vmor %vm333, %vm413
        %vm430 = vmor %vm334, %vm414
        %vm431 = vmor %vm335, %vm415
        %vm432 = vmor %vm336, %vm416
        %vm433 = vmor %vm337, %vm417
        %vm434 = vmor %vm338, %vm418
        %v435 = vadd.s32 %v147, 17
        %v436 = vadd.s32 %v148, 17
        %v437 = vadd.s32 %v149, 17
        %v438 = vadd.s32 %v150, 17
        %v439 = vadd.s32 %v151, 17
        %v440 = vadd.s32 %v152, 17
        %v441 = vadd.s32 %v153, 17
        %v442 = vadd.s32 %v154, 17
        %v443 = vadd.s32 %v155, 17
        %v444 = vadd.s32 %v156, 17
        %v445 = vadd.s32 %v157, 17
        %v446 = vadd.s32 %v158, 17
        %v447 = vadd.s32 %v159, 17
        %v448 = vadd.s32 %v160, 17
        %v449 = vadd.s32 %v161, 17
        %v450 = vadd.s32 %v162, 17
        %451 = vset.pattern.permute.xlu0 3
        %452 = vperm.xlu0 %451, %v435
        %v453 = vpop.permute.xlu0 %452
        %454 = vset.pattern.permute.xlu0 3
        %455 = vperm.xlu0 %454, %v436
        %v456 = vpop.permute.xlu0 %455
        %457 = vset.pattern.permute.xlu0 3
        %458 = vperm.xlu0 %457, %v437
        %v459 = vpop.permute.xlu0 %458
        %460 = vset.pattern.permute.xlu0 3
        %461 = vperm.xlu0 %460, %v438
        %v462 = vpop.permute.xlu0 %461
        %463 = vset.pattern.permute.xlu0 3
        %464 = vperm.xlu0 %463, %v439
        %v465 = vpop.permute.xlu0 %464
        %466 = vset.pattern.permute.xlu0 3
        %467 = vperm.xlu0 %466, %v440
        %v468 = vpop.permute.xlu0 %467
        %469 = vset.pattern.permute.xlu0 3
        %470 = vperm.xlu0 %469, %v441
        %v471 = vpop.permute.xlu0 %470
        %472 = vset.pattern.permute.xlu0 3
        %473 = vperm.xlu0 %472, %v442
        %v474 = vpop.permute.xlu0 %473
        %475 = vset.pattern.permute.xlu0 3
        %476 = vperm.xlu0 %475, %v443
        %v477 = vpop.permute.xlu0 %476
        %478 = vset.pattern.permute.xlu0 3
        %479 = vperm.xlu0 %478, %v444
        %v480 = vpop.permute.xlu0 %479
        %481 = vset.pattern.permute.xlu0 3
        %482 = vperm.xlu0 %481, %v445
        %v483 = vpop.permute.xlu0 %482
        %484 = vset.pattern.permute.xlu0 3
        %485 = vperm.xlu0 %484, %v446
        %v486 = vpop.permute.xlu0 %485
        %487 = vset.pattern.permute.xlu0 3
        %488 = vperm.xlu0 %487, %v447
        %v489 = vpop.permute.xlu0 %488
        %490 = vset.pattern.permute.xlu0 3
        %491 = vperm.xlu0 %490, %v448
        %v492 = vpop.permute.xlu0 %491
        %493 = vset.pattern.permute.xlu0 3
        %494 = vperm.xlu0 %493, %v449
        %v495 = vpop.permute.xlu0 %494
        %496 = vset.pattern.permute.xlu0 3
        %497 = vperm.xlu0 %496, %v450
        %v498 = vpop.permute.xlu0 %497
        %vm499 = vcmp.eq.s32.totalorder %v146, %v453
        %vm500 = vcmp.eq.s32.totalorder %v146, %v456
        %vm501 = vcmp.eq.s32.totalorder %v146, %v459
        %vm502 = vcmp.eq.s32.totalorder %v146, %v462
        %vm503 = vcmp.eq.s32.totalorder %v146, %v465
        %vm504 = vcmp.eq.s32.totalorder %v146, %v468
        %vm505 = vcmp.eq.s32.totalorder %v146, %v471
        %vm506 = vcmp.eq.s32.totalorder %v146, %v474
        %vm507 = vcmp.eq.s32.totalorder %v146, %v477
        %vm508 = vcmp.eq.s32.totalorder %v146, %v480
        %vm509 = vcmp.eq.s32.totalorder %v146, %v483
        %vm510 = vcmp.eq.s32.totalorder %v146, %v486
        %vm511 = vcmp.eq.s32.totalorder %v146, %v489
        %vm512 = vcmp.eq.s32.totalorder %v146, %v492
        %vm513 = vcmp.eq.s32.totalorder %v146, %v495
        %vm514 = vcmp.eq.s32.totalorder %v146, %v498
        %vm515 = vmor %vm419, %vm499
        %vm516 = vmor %vm420, %vm500
        %vm517 = vmor %vm421, %vm501
        %vm518 = vmor %vm422, %vm502
        %vm519 = vmor %vm423, %vm503
        %vm520 = vmor %vm424, %vm504
        %vm521 = vmor %vm425, %vm505
        %vm522 = vmor %vm426, %vm506
        %vm523 = vmor %vm427, %vm507
        %vm524 = vmor %vm428, %vm508
        %vm525 = vmor %vm429, %vm509
        %vm526 = vmor %vm430, %vm510
        %vm527 = vmor %vm431, %vm511
        %vm528 = vmor %vm432, %vm512
        %vm529 = vmor %vm433, %vm513
        %vm530 = vmor %vm434, %vm514
        %v531 = vadd.s32 %v147, 29
        %v532 = vadd.s32 %v148, 29
        %v533 = vadd.s32 %v149, 29
        %v534 = vadd.s32 %v150, 29
        %v535 = vadd.s32 %v151, 29
        %v536 = vadd.s32 %v152, 29
        %v537 = vadd.s32 %v153, 29
        %v538 = vadd.s32 %v154, 29
        %v539 = vadd.s32 %v155, 29
        %v540 = vadd.s32 %v156, 29
        %v541 = vadd.s32 %v157, 29
        %v542 = vadd.s32 %v158, 29
        %v543 = vadd.s32 %v159, 29
        %v544 = vadd.s32 %v160, 29
        %v545 = vadd.s32 %v161, 29
        %v546 = vadd.s32 %v162, 29
        %547 = vset.pattern.permute.xlu0 4
        %548 = vperm.xlu0 %547, %v531
        %v549 = vpop.permute.xlu0 %548
        %550 = vset.pattern.permute.xlu0 4
        %551 = vperm.xlu0 %550, %v532
        %v552 = vpop.permute.xlu0 %551
        %553 = vset.pattern.permute.xlu0 4
        %554 = vperm.xlu0 %553, %v533
        %v555 = vpop.permute.xlu0 %554
        %556 = vset.pattern.permute.xlu0 4
        %557 = vperm.xlu0 %556, %v534
        %v558 = vpop.permute.xlu0 %557
        %559 = vset.pattern.permute.xlu0 4
        %560 = vperm.xlu0 %559, %v535
        %v561 = vpop.permute.xlu0 %560
        %562 = vset.pattern.permute.xlu0 4
        %563 = vperm.xlu0 %562, %v536
        %v564 = vpop.permute.xlu0 %563
        %565 = vset.pattern.permute.xlu0 4
        %566 = vperm.xlu0 %565, %v537
        %v567 = vpop.permute.xlu0 %566
        %568 = vset.pattern.permute.xlu0 4
        %569 = vperm.xlu0 %568, %v538
        %v570 = vpop.permute.xlu0 %569
        %571 = vset.pattern.permute.xlu0 4
        %572 = vperm.xlu0 %571, %v539
        %v573 = vpop.permute.xlu0 %572
        %574 = vset.pattern.permute.xlu0 4
        %575 = vperm.xlu0 %574, %v540
        %v576 = vpop.permute.xlu0 %575
        %577 = vset.pattern.permute.xlu0 4
        %578 = vperm.xlu0 %577, %v541
        %v579 = vpop.permute.xlu0 %578
        %580 = vset.pattern.permute.xlu0 4
        %581 = vperm.xlu0 %580, %v542
        %v582 = vpop.permute.xlu0 %581
        %583 = vset.pattern.permute.xlu0 4
        %584 = vperm.xlu0 %583, %v543
        %v585 = vpop.permute.xlu0 %584
        %586 = vset.pattern.permute.xlu0 4
        %587 = vperm.xlu0 %586, %v544
        %v588 = vpop.permute.xlu0 %587
        %589 = vset.pattern.permute.xlu0 4
        %590 = vperm.xlu0 %589, %v545
        %v591 = vpop.permute.xlu0 %590
        %592 = vset.pattern.permute.xlu0 4
        %593 = vperm.xlu0 %592, %v546
        %v594 = vpop.permute.xlu0 %593
        %vm595 = vcmp.eq.s32.totalorder %v146, %v549
        %vm596 = vcmp.eq.s32.totalorder %v146, %v552
        %vm597 = vcmp.eq.s32.totalorder %v146, %v555
        %vm598 = vcmp.eq.s32.totalorder %v146, %v558
        %vm599 = vcmp.eq.s32.totalorder %v146, %v561
        %vm600 = vcmp.eq.s32.totalorder %v146, %v564
        %vm601 = vcmp.eq.s32.totalorder %v146, %v567
        %vm602 = vcmp.eq.s32.totalorder %v146, %v570
        %vm603 = vcmp.eq.s32.totalorder %v146, %v573
        %vm604 = vcmp.eq.s32.totalorder %v146, %v576
        %vm605 = vcmp.eq.s32.totalorder %v146, %v579
        %vm606 = vcmp.eq.s32.totalorder %v146, %v582
        %vm607 = vcmp.eq.s32.totalorder %v146, %v585
        %vm608 = vcmp.eq.s32.totalorder %v146, %v588
        %vm609 = vcmp.eq.s32.totalorder %v146, %v591
        %vm610 = vcmp.eq.s32.totalorder %v146, %v594
        %vm611 = vmor %vm515, %vm595
        %vm612 = vmor %vm516, %vm596
        %vm613 = vmor %vm517, %vm597
        %vm614 = vmor %vm518, %vm598
        %vm615 = vmor %vm519, %vm599
        %vm616 = vmor %vm520, %vm600
        %vm617 = vmor %vm521, %vm601
        %vm618 = vmor %vm522, %vm602
        %vm619 = vmor %vm523, %vm603
        %vm620 = vmor %vm524, %vm604
        %vm621 = vmor %vm525, %vm605
        %vm622 = vmor %vm526, %vm606
        %vm623 = vmor %vm527, %vm607
        %vm624 = vmor %vm528, %vm608
        %vm625 = vmor %vm529, %vm609
        %vm626 = vmor %vm530, %vm610
        %v627 = vadd.s32 %v147, 39
        %v628 = vadd.s32 %v148, 39
        %v629 = vadd.s32 %v149, 39
        %v630 = vadd.s32 %v150, 39
        %v631 = vadd.s32 %v151, 39
        %v632 = vadd.s32 %v152, 39
        %v633 = vadd.s32 %v153, 39
        %v634 = vadd.s32 %v154, 39
        %v635 = vadd.s32 %v155, 39
        %v636 = vadd.s32 %v156, 39
        %v637 = vadd.s32 %v157, 39
        %v638 = vadd.s32 %v158, 39
        %v639 = vadd.s32 %v159, 39
        %v640 = vadd.s32 %v160, 39
        %v641 = vadd.s32 %v161, 39
        %v642 = vadd.s32 %v162, 39
        %643 = vset.pattern.permute.xlu0 5
        %644 = vperm.xlu0 %643, %v627
        %v645 = vpop.permute.xlu0 %644
        %646 = vset.pattern.permute.xlu0 5
        %647 = vperm.xlu0 %646, %v628
        %v648 = vpop.permute.xlu0 %647
        %649 = vset.pattern.permute.xlu0 5
        %650 = vperm.xlu0 %649, %v629
        %v651 = vpop.permute.xlu0 %650
        %652 = vset.pattern.permute.xlu0 5
        %653 = vperm.xlu0 %652, %v630
        %v654 = vpop.permute.xlu0 %653
        %655 = vset.pattern.permute.xlu0 5
        %656 = vperm.xlu0 %655, %v631
        %v657 = vpop.permute.xlu0 %656
        %658 = vset.pattern.permute.xlu0 5
        %659 = vperm.xlu0 %658, %v632
        %v660 = vpop.permute.xlu0 %659
        %661 = vset.pattern.permute.xlu0 5
        %662 = vperm.xlu0 %661, %v633
        %v663 = vpop.permute.xlu0 %662
        %664 = vset.pattern.permute.xlu0 5
        %665 = vperm.xlu0 %664, %v634
        %v666 = vpop.permute.xlu0 %665
        %667 = vset.pattern.permute.xlu0 5
        %668 = vperm.xlu0 %667, %v635
        %v669 = vpop.permute.xlu0 %668
        %670 = vset.pattern.permute.xlu0 5
        %671 = vperm.xlu0 %670, %v636
        %v672 = vpop.permute.xlu0 %671
        %673 = vset.pattern.permute.xlu0 5
        %674 = vperm.xlu0 %673, %v637
        %v675 = vpop.permute.xlu0 %674
        %676 = vset.pattern.permute.xlu0 5
        %677 = vperm.xlu0 %676, %v638
        %v678 = vpop.permute.xlu0 %677
        %679 = vset.pattern.permute.xlu0 5
        %680 = vperm.xlu0 %679, %v639
        %v681 = vpop.permute.xlu0 %680
        %682 = vset.pattern.permute.xlu0 5
        %683 = vperm.xlu0 %682, %v640
        %v684 = vpop.permute.xlu0 %683
        %685 = vset.pattern.permute.xlu0 5
        %686 = vperm.xlu0 %685, %v641
        %v687 = vpop.permute.xlu0 %686
        %688 = vset.pattern.permute.xlu0 5
        %689 = vperm.xlu0 %688, %v642
        %v690 = vpop.permute.xlu0 %689
        %vm691 = vcmp.eq.s32.totalorder %v146, %v645
        %vm692 = vcmp.eq.s32.totalorder %v146, %v648
        %vm693 = vcmp.eq.s32.totalorder %v146, %v651
        %vm694 = vcmp.eq.s32.totalorder %v146, %v654
        %vm695 = vcmp.eq.s32.totalorder %v146, %v657
        %vm696 = vcmp.eq.s32.totalorder %v146, %v660
        %vm697 = vcmp.eq.s32.totalorder %v146, %v663
        %vm698 = vcmp.eq.s32.totalorder %v146, %v666
        %vm699 = vcmp.eq.s32.totalorder %v146, %v669
        %vm700 = vcmp.eq.s32.totalorder %v146, %v672
        %vm701 = vcmp.eq.s32.totalorder %v146, %v675
        %vm702 = vcmp.eq.s32.totalorder %v146, %v678
        %vm703 = vcmp.eq.s32.totalorder %v146, %v681
        %vm704 = vcmp.eq.s32.totalorder %v146, %v684
        %vm705 = vcmp.eq.s32.totalorder %v146, %v687
        %vm706 = vcmp.eq.s32.totalorder %v146, %v690
        %vm707 = vmor %vm611, %vm691
        %vm708 = vmor %vm612, %vm692
        %vm709 = vmor %vm613, %vm693
        %vm710 = vmor %vm614, %vm694
        %vm711 = vmor %vm615, %vm695
        %vm712 = vmor %vm616, %vm696
        %vm713 = vmor %vm617, %vm697
        %vm714 = vmor %vm618, %vm698
        %vm715 = vmor %vm619, %vm699
        %vm716 = vmor %vm620, %vm700
        %vm717 = vmor %vm621, %vm701
        %vm718 = vmor %vm622, %vm702
        %vm719 = vmor %vm623, %vm703
        %vm720 = vmor %vm624, %vm704
        %vm721 = vmor %vm625, %vm705
        %vm722 = vmor %vm626, %vm706
        %v723 = vadd.s32 %v147, 45
        %v724 = vadd.s32 %v148, 45
        %v725 = vadd.s32 %v149, 45
        %v726 = vadd.s32 %v150, 45
        %v727 = vadd.s32 %v151, 45
        %v728 = vadd.s32 %v152, 45
        %v729 = vadd.s32 %v153, 45
        %v730 = vadd.s32 %v154, 45
        %v731 = vadd.s32 %v155, 45
        %v732 = vadd.s32 %v156, 45
        %v733 = vadd.s32 %v157, 45
        %v734 = vadd.s32 %v158, 45
        %v735 = vadd.s32 %v159, 45
        %v736 = vadd.s32 %v160, 45
        %v737 = vadd.s32 %v161, 45
        %v738 = vadd.s32 %v162, 45
        %739 = vset.pattern.permute.xlu0 6
        %740 = vperm.xlu0 %739, %v723
        %v741 = vpop.permute.xlu0 %740
        %742 = vset.pattern.permute.xlu0 6
        %743 = vperm.xlu0 %742, %v724
        %v744 = vpop.permute.xlu0 %743
        %745 = vset.pattern.permute.xlu0 6
        %746 = vperm.xlu0 %745, %v725
        %v747 = vpop.permute.xlu0 %746
        %748 = vset.pattern.permute.xlu0 6
        %749 = vperm.xlu0 %748, %v726
        %v750 = vpop.permute.xlu0 %749
        %751 = vset.pattern.permute.xlu0 6
        %752 = vperm.xlu0 %751, %v727
        %v753 = vpop.permute.xlu0 %752
        %754 = vset.pattern.permute.xlu0 6
        %755 = vperm.xlu0 %754, %v728
        %v756 = vpop.permute.xlu0 %755
        %757 = vset.pattern.permute.xlu0 6
        %758 = vperm.xlu0 %757, %v729
        %v759 = vpop.permute.xlu0 %758
        %760 = vset.pattern.permute.xlu0 6
        %761 = vperm.xlu0 %760, %v730
        %v762 = vpop.permute.xlu0 %761
        %763 = vset.pattern.permute.xlu0 6
        %764 = vperm.xlu0 %763, %v731
        %v765 = vpop.permute.xlu0 %764
        %766 = vset.pattern.permute.xlu0 6
        %767 = vperm.xlu0 %766, %v732
        %v768 = vpop.permute.xlu0 %767
        %769 = vset.pattern.permute.xlu0 6
        %770 = vperm.xlu0 %769, %v733
        %v771 = vpop.permute.xlu0 %770
        %772 = vset.pattern.permute.xlu0 6
        %773 = vperm.xlu0 %772, %v734
        %v774 = vpop.permute.xlu0 %773
        %775 = vset.pattern.permute.xlu0 6
        %776 = vperm.xlu0 %775, %v735
        %v777 = vpop.permute.xlu0 %776
        %778 = vset.pattern.permute.xlu0 6
        %779 = vperm.xlu0 %778, %v736
        %v780 = vpop.permute.xlu0 %779
        %781 = vset.pattern.permute.xlu0 6
        %782 = vperm.xlu0 %781, %v737
        %v783 = vpop.permute.xlu0 %782
        %784 = vset.pattern.permute.xlu0 6
        %785 = vperm.xlu0 %784, %v738
        %v786 = vpop.permute.xlu0 %785
        %vm787 = vcmp.eq.s32.totalorder %v146, %v741
        %vm788 = vcmp.eq.s32.totalorder %v146, %v744
        %vm789 = vcmp.eq.s32.totalorder %v146, %v747
        %vm790 = vcmp.eq.s32.totalorder %v146, %v750
        %vm791 = vcmp.eq.s32.totalorder %v146, %v753
        %vm792 = vcmp.eq.s32.totalorder %v146, %v756
        %vm793 = vcmp.eq.s32.totalorder %v146, %v759
        %vm794 = vcmp.eq.s32.totalorder %v146, %v762
        %vm795 = vcmp.eq.s32.totalorder %v146, %v765
        %vm796 = vcmp.eq.s32.totalorder %v146, %v768
        %vm797 = vcmp.eq.s32.totalorder %v146, %v771
        %vm798 = vcmp.eq.s32.totalorder %v146, %v774
        %vm799 = vcmp.eq.s32.totalorder %v146, %v777
        %vm800 = vcmp.eq.s32.totalorder %v146, %v780
        %vm801 = vcmp.eq.s32.totalorder %v146, %v783
        %vm802 = vcmp.eq.s32.totalorder %v146, %v786
        %vm803 = vmor %vm707, %vm787
        %vm804 = vmor %vm708, %vm788
        %vm805 = vmor %vm709, %vm789
        %vm806 = vmor %vm710, %vm790
        %vm807 = vmor %vm711, %vm791
        %vm808 = vmor %vm712, %vm792
        %vm809 = vmor %vm713, %vm793
        %vm810 = vmor %vm714, %vm794
        %vm811 = vmor %vm715, %vm795
        %vm812 = vmor %vm716, %vm796
        %vm813 = vmor %vm717, %vm797
        %vm814 = vmor %vm718, %vm798
        %vm815 = vmor %vm719, %vm799
        %vm816 = vmor %vm720, %vm800
        %vm817 = vmor %vm721, %vm801
        %vm818 = vmor %vm722, %vm802
        %v819 = vadd.s32 %v147, 51
        %v820 = vadd.s32 %v148, 51
        %v821 = vadd.s32 %v149, 51
        %v822 = vadd.s32 %v150, 51
        %v823 = vadd.s32 %v151, 51
        %v824 = vadd.s32 %v152, 51
        %v825 = vadd.s32 %v153, 51
        %v826 = vadd.s32 %v154, 51
        %v827 = vadd.s32 %v155, 51
        %v828 = vadd.s32 %v156, 51
        %v829 = vadd.s32 %v157, 51
        %v830 = vadd.s32 %v158, 51
        %v831 = vadd.s32 %v159, 51
        %v832 = vadd.s32 %v160, 51
        %v833 = vadd.s32 %v161, 51
        %v834 = vadd.s32 %v162, 51
        %835 = vset.pattern.permute.xlu0 7
        %836 = vperm.xlu0 %835, %v819
        %v837 = vpop.permute.xlu0 %836
        %838 = vset.pattern.permute.xlu0 7
        %839 = vperm.xlu0 %838, %v820
        %v840 = vpop.permute.xlu0 %839
        %841 = vset.pattern.permute.xlu0 7
        %842 = vperm.xlu0 %841, %v821
        %v843 = vpop.permute.xlu0 %842
        %844 = vset.pattern.permute.xlu0 7
        %845 = vperm.xlu0 %844, %v822
        %v846 = vpop.permute.xlu0 %845
        %847 = vset.pattern.permute.xlu0 7
        %848 = vperm.xlu0 %847, %v823
        %v849 = vpop.permute.xlu0 %848
        %850 = vset.pattern.permute.xlu0 7
        %851 = vperm.xlu0 %850, %v824
        %v852 = vpop.permute.xlu0 %851
        %853 = vset.pattern.permute.xlu0 7
        %854 = vperm.xlu0 %853, %v825
        %v855 = vpop.permute.xlu0 %854
        %856 = vset.pattern.permute.xlu0 7
        %857 = vperm.xlu0 %856, %v826
        %v858 = vpop.permute.xlu0 %857
        %859 = vset.pattern.permute.xlu0 7
        %860 = vperm.xlu0 %859, %v827
        %v861 = vpop.permute.xlu0 %860
        %862 = vset.pattern.permute.xlu0 7
        %863 = vperm.xlu0 %862, %v828
        %v864 = vpop.permute.xlu0 %863
        %865 = vset.pattern.permute.xlu0 7
        %866 = vperm.xlu0 %865, %v829
        %v867 = vpop.permute.xlu0 %866
        %868 = vset.pattern.permute.xlu0 7
        %869 = vperm.xlu0 %868, %v830
        %v870 = vpop.permute.xlu0 %869
        %871 = vset.pattern.permute.xlu0 7
        %872 = vperm.xlu0 %871, %v831
        %v873 = vpop.permute.xlu0 %872
        %874 = vset.pattern.permute.xlu0 7
        %875 = vperm.xlu0 %874, %v832
        %v876 = vpop.permute.xlu0 %875
        %877 = vset.pattern.permute.xlu0 7
        %878 = vperm.xlu0 %877, %v833
        %v879 = vpop.permute.xlu0 %878
        %880 = vset.pattern.permute.xlu0 7
        %881 = vperm.xlu0 %880, %v834
        %v882 = vpop.permute.xlu0 %881
        %vm883 = vcmp.eq.s32.totalorder %v146, %v837
        %vm884 = vcmp.eq.s32.totalorder %v146, %v840
        %vm885 = vcmp.eq.s32.totalorder %v146, %v843
        %vm886 = vcmp.eq.s32.totalorder %v146, %v846
        %vm887 = vcmp.eq.s32.totalorder %v146, %v849
        %vm888 = vcmp.eq.s32.totalorder %v146, %v852
        %vm889 = vcmp.eq.s32.totalorder %v146, %v855
        %vm890 = vcmp.eq.s32.totalorder %v146, %v858
        %vm891 = vcmp.eq.s32.totalorder %v146, %v861
        %vm892 = vcmp.eq.s32.totalorder %v146, %v864
        %vm893 = vcmp.eq.s32.totalorder %v146, %v867
        %vm894 = vcmp.eq.s32.totalorder %v146, %v870
        %vm895 = vcmp.eq.s32.totalorder %v146, %v873
        %vm896 = vcmp.eq.s32.totalorder %v146, %v876
        %vm897 = vcmp.eq.s32.totalorder %v146, %v879
        %vm898 = vcmp.eq.s32.totalorder %v146, %v882
        %vm899 = vmor %vm803, %vm883
        %vm900 = vmor %vm804, %vm884
        %vm901 = vmor %vm805, %vm885
        %vm902 = vmor %vm806, %vm886
        %vm903 = vmor %vm807, %vm887
        %vm904 = vmor %vm808, %vm888
        %vm905 = vmor %vm809, %vm889
        %vm906 = vmor %vm810, %vm890
        %vm907 = vmor %vm811, %vm891
        %vm908 = vmor %vm812, %vm892
        %vm909 = vmor %vm813, %vm893
        %vm910 = vmor %vm814, %vm894
        %vm911 = vmor %vm815, %vm895
        %vm912 = vmor %vm816, %vm896
        %vm913 = vmor %vm817, %vm897
        %vm914 = vmor %vm818, %vm898
        %v915 = vadd.s32 %v147, 53
        %v916 = vadd.s32 %v148, 53
        %v917 = vadd.s32 %v149, 53
        %v918 = vadd.s32 %v150, 53
        %v919 = vadd.s32 %v151, 53
        %v920 = vadd.s32 %v152, 53
        %v921 = vadd.s32 %v153, 53
        %v922 = vadd.s32 %v154, 53
        %v923 = vadd.s32 %v155, 53
        %v924 = vadd.s32 %v156, 53
        %v925 = vadd.s32 %v157, 53
        %v926 = vadd.s32 %v158, 53
        %v927 = vadd.s32 %v159, 53
        %v928 = vadd.s32 %v160, 53
        %v929 = vadd.s32 %v161, 53
        %v930 = vadd.s32 %v162, 53
        %931 = vset.pattern.permute.xlu0 8
        %932 = vperm.xlu0 %931, %v915
        %v933 = vpop.permute.xlu0 %932
        %934 = vset.pattern.permute.xlu0 8
        %935 = vperm.xlu0 %934, %v916
        %v936 = vpop.permute.xlu0 %935
        %937 = vset.pattern.permute.xlu0 8
        %938 = vperm.xlu0 %937, %v917
        %v939 = vpop.permute.xlu0 %938
        %940 = vset.pattern.permute.xlu0 8
        %941 = vperm.xlu0 %940, %v918
        %v942 = vpop.permute.xlu0 %941
        %943 = vset.pattern.permute.xlu0 8
        %944 = vperm.xlu0 %943, %v919
        %v945 = vpop.permute.xlu0 %944
        %946 = vset.pattern.permute.xlu0 8
        %947 = vperm.xlu0 %946, %v920
        %v948 = vpop.permute.xlu0 %947
        %949 = vset.pattern.permute.xlu0 8
        %950 = vperm.xlu0 %949, %v921
        %v951 = vpop.permute.xlu0 %950
        %952 = vset.pattern.permute.xlu0 8
        %953 = vperm.xlu0 %952, %v922
        %v954 = vpop.permute.xlu0 %953
        %955 = vset.pattern.permute.xlu0 8
        %956 = vperm.xlu0 %955, %v923
        %v957 = vpop.permute.xlu0 %956
        %958 = vset.pattern.permute.xlu0 8
        %959 = vperm.xlu0 %958, %v924
        %v960 = vpop.permute.xlu0 %959
        %961 = vset.pattern.permute.xlu0 8
        %962 = vperm.xlu0 %961, %v925
        %v963 = vpop.permute.xlu0 %962
        %964 = vset.pattern.permute.xlu0 8
        %965 = vperm.xlu0 %964, %v926
        %v966 = vpop.permute.xlu0 %965
        %967 = vset.pattern.permute.xlu0 8
        %968 = vperm.xlu0 %967, %v927
        %v969 = vpop.permute.xlu0 %968
        %970 = vset.pattern.permute.xlu0 8
        %971 = vperm.xlu0 %970, %v928
        %v972 = vpop.permute.xlu0 %971
        %973 = vset.pattern.permute.xlu0 8
        %974 = vperm.xlu0 %973, %v929
        %v975 = vpop.permute.xlu0 %974
        %976 = vset.pattern.permute.xlu0 8
        %977 = vperm.xlu0 %976, %v930
        %v978 = vpop.permute.xlu0 %977
        %vm979 = vcmp.eq.s32.totalorder %v146, %v933
        %vm980 = vcmp.eq.s32.totalorder %v146, %v936
        %vm981 = vcmp.eq.s32.totalorder %v146, %v939
        %vm982 = vcmp.eq.s32.totalorder %v146, %v942
        %vm983 = vcmp.eq.s32.totalorder %v146, %v945
        %vm984 = vcmp.eq.s32.totalorder %v146, %v948
        %vm985 = vcmp.eq.s32.totalorder %v146, %v951
        %vm986 = vcmp.eq.s32.totalorder %v146, %v954
        %vm987 = vcmp.eq.s32.totalorder %v146, %v957
        %vm988 = vcmp.eq.s32.totalorder %v146, %v960
        %vm989 = vcmp.eq.s32.totalorder %v146, %v963
        %vm990 = vcmp.eq.s32.totalorder %v146, %v966
        %vm991 = vcmp.eq.s32.totalorder %v146, %v969
        %vm992 = vcmp.eq.s32.totalorder %v146, %v972
        %vm993 = vcmp.eq.s32.totalorder %v146, %v975
        %vm994 = vcmp.eq.s32.totalorder %v146, %v978
        %vm995 = vmor %vm899, %vm979
        %vm996 = vmor %vm900, %vm980
        %vm997 = vmor %vm901, %vm981
        %vm998 = vmor %vm902, %vm982
        %vm999 = vmor %vm903, %vm983
        %vm1000 = vmor %vm904, %vm984
        %vm1001 = vmor %vm905, %vm985
        %vm1002 = vmor %vm906, %vm986
        %vm1003 = vmor %vm907, %vm987
        %vm1004 = vmor %vm908, %vm988
        %vm1005 = vmor %vm909, %vm989
        %vm1006 = vmor %vm910, %vm990
        %vm1007 = vmor %vm911, %vm991
        %vm1008 = vmor %vm912, %vm992
        %vm1009 = vmor %vm913, %vm993
        %vm1010 = vmor %vm914, %vm994
        %v1011 = vsel %vm995, 1, 0
        %v1012 = vsel %vm996, 1, 0
        %v1013 = vsel %vm997, 1, 0
        %v1014 = vsel %vm998, 1, 0
        %v1015 = vsel %vm999, 1, 0
        %v1016 = vsel %vm1000, 1, 0
        %v1017 = vsel %vm1001, 1, 0
        %v1018 = vsel %vm1002, 1, 0
        %v1019 = vsel %vm1003, 1, 0
        %v1020 = vsel %vm1004, 1, 0
        %v1021 = vsel %vm1005, 1, 0
        %v1022 = vsel %vm1006, 1, 0
        %v1023 = vsel %vm1007, 1, 0
        %v1024 = vsel %vm1008, 1, 0
        %v1025 = vsel %vm1009, 1, 0
        %v1026 = vsel %vm1010, 1, 0
        %v1027 = vcvt.s32.f32 %v1011
        %v1028 = vcvt.s32.f32 %v1012
        %v1029 = vcvt.s32.f32 %v1013
        %v1030 = vcvt.s32.f32 %v1014
        %v1031 = vcvt.s32.f32 %v1015
        %v1032 = vcvt.s32.f32 %v1016
        %v1033 = vcvt.s32.f32 %v1017
        %v1034 = vcvt.s32.f32 %v1018
        %v1035 = vcvt.s32.f32 %v1019
        %v1036 = vcvt.s32.f32 %v1020
        %v1037 = vcvt.s32.f32 %v1021
        %v1038 = vcvt.s32.f32 %v1022
        %v1039 = vcvt.s32.f32 %v1023
        %v1040 = vcvt.s32.f32 %v1024
        %v1041 = vcvt.s32.f32 %v1025
        %v1042 = vcvt.s32.f32 %v1026
        %v1043 = vld [vmem:[%s1 + $0x80] sm:$0xff]
        %v1044 = vld [vmem:[%s1 + $0x88] sm:$0xff]
        %v1045 = vld [vmem:[%s1 + $0x90] sm:$0xff]
        %v1046 = vld [vmem:[%s1 + $0x98] sm:$0xff]
        %v1047 = vld [vmem:[%s1 + $0xa0] sm:$0xff]
        %v1048 = vld [vmem:[%s1 + $0xa8] sm:$0xff]
        %v1049 = vld [vmem:[%s1 + $0xb0] sm:$0xff]
        %v1050 = vld [vmem:[%s1 + $0xb8] sm:$0xff]
        %v1051 = vld [vmem:[%s1 + $0xc0] sm:$0xff]
        %v1052 = vld [vmem:[%s1 + $0xc8] sm:$0xff]
        %v1053 = vld [vmem:[%s1 + $0xd0] sm:$0xff]
        %v1054 = vld [vmem:[%s1 + $0xd8] sm:$0xff]
        %v1055 = vld [vmem:[%s1 + $0xe0] sm:$0xff]
        %v1056 = vld [vmem:[%s1 + $0xe8] sm:$0xff]
        %v1057 = vld [vmem:[%s1 + $0xf0] sm:$0xff]
        %v1058 = vld [vmem:[%s1 + $0xf8] sm:$0xff]
        %1059 = vmatprep.subr.mxu0 0.0
        %1060 = vmatpush1.msra.mxu0 %v1043
        %1061 = vmatprep.subr.mxu0 0.0
        %1062 = vmatpush1.msra.mxu0 %v1044
        %1063 = vmatprep.subr.mxu0 0.0
        %1064 = vmatpush1.msra.mxu0 %v1045
        %1065 = vmatprep.subr.mxu0 0.0
        %1066 = vmatpush1.msra.mxu0 %v1046
        %1067 = vmatprep.subr.mxu0 0.0
        %1068 = vmatpush1.msra.mxu0 %v1047
        %1069 = vmatprep.subr.mxu0 0.0
        %1070 = vmatpush1.msra.mxu0 %v1048
        %1071 = vmatprep.subr.mxu0 0.0
        %1072 = vmatpush1.msra.mxu0 %v1049
        %1073 = vmatprep.subr.mxu0 0.0
        %1074 = vmatpush1.msra.mxu0 %v1050
        %1075 = vmatprep.subr.mxu0 0.0
        %1076 = vmatpush1.msra.mxu0 %v1051
        %1077 = vmatprep.subr.mxu0 0.0
        %1078 = vmatpush1.msra.mxu0 %v1052
        %1079 = vmatprep.subr.mxu0 0.0
        %1080 = vmatpush1.msra.mxu0 %v1053
        %1081 = vmatprep.subr.mxu0 0.0
        %1082 = vmatpush1.msra.mxu0 %v1054
        %1083 = vmatprep.subr.mxu0 0.0
        %1084 = vmatpush1.msra.mxu0 %v1055
        %1085 = vmatprep.subr.mxu0 0.0
        %1086 = vmatpush1.msra.mxu0 %v1056
        %1087 = vmatprep.subr.mxu0 0.0
        %1088 = vmatpush1.msra.mxu0 %v1057
        %1089 = vmatprep.subr.mxu0 0.0
        %1090 = vmatpush1.msra.mxu0 %v1058
        %1091 = vmatprep.subr.mxu0 0.0
        %1092 = vmatpush1.msra.mxu0 0.0
        %1093 = vmatprep.subr.mxu0 0.0
        %1094 = vmatpush1.msra.mxu0 0.0
        %1095 = vmatprep.subr.mxu0 0.0
        %1096 = vmatpush1.msra.mxu0 0.0
        %1097 = vmatprep.subr.mxu0 0.0
        %1098 = vmatpush1.msra.mxu0 0.0
        %1099 = vmatprep.subr.mxu0 0.0
        %1100 = vmatpush1.msra.mxu0 0.0
        %1101 = vmatprep.subr.mxu0 0.0
        %1102 = vmatpush1.msra.mxu0 0.0
        %1103 = vmatprep.subr.mxu0 0.0
        %1104 = vmatpush1.msra.mxu0 0.0
        %1105 = vmatprep.subr.mxu0 0.0
        %1106 = vmatpush1.msra.mxu0 0.0
        %1107 = vmatprep.subr.mxu0 0.0
        %1108 = vmatpush1.msra.mxu0 0.0
        %1109 = vmatprep.subr.mxu0 0.0
        %1110 = vmatpush1.msra.mxu0 0.0
        %1111 = vmatprep.subr.mxu0 0.0
        %1112 = vmatpush1.msra.mxu0 0.0
        %1113 = vmatprep.subr.mxu0 0.0
        %1114 = vmatpush1.msra.mxu0 0.0
        %1115 = vmatprep.subr.mxu0 0.0
        %1116 = vmatpush1.msra.mxu0 0.0
        %1117 = vmatprep.subr.mxu0 0.0
        %1118 = vmatpush1.msra.mxu0 0.0
        %1119 = vmatprep.subr.mxu0 0.0
        %1120 = vmatpush1.msra.mxu0 0.0
        %1121 = vmatprep.subr.mxu0 0.0
        %1122 = vmatpush1.msra.mxu0 0.0
        %1123 = vmatprep.mubr.f32.mxu0 0.0
        %1124 = vmatmul.mubr.f32.gmra.mrb[0].mxu0 %v1027
        %v1125 = vpop.f32.mrb[0].mxu0
        %v1126 = vadd.f32 0.0, %v1125
        %v1127 = vpop.f32.mrb[0].mxu0
        %1128 = vmatprep.mubr.f32.mxu0 0.0
        %1129 = vmatmul.mubr.f32.gmra.mrb[0].mxu0 %v1028
        %v1130 = vpop.f32.mrb[0].mxu0
        %v1131 = vadd.f32 0.0, %v1130
        %v1132 = vpop.f32.mrb[0].mxu0
        %1133 = vmatprep.mubr.f32.mxu0 0.0
        %1134 = vmatmul.mubr.f32.gmra.mrb[0].mxu0 %v1029
        %v1135 = vpop.f32.mrb[0].mxu0
        %v1136 = vadd.f32 0.0, %v1135
        %v1137 = vpop.f32.mrb[0].mxu0
        %1138 = vmatprep.mubr.f32.mxu0 0.0
        %1139 = vmatmul.mubr.f32.gmra.mrb[0].mxu0 %v1030
        %v1140 = vpop.f32.mrb[0].mxu0
        %v1141 = vadd.f32 0.0, %v1140
        %v1142 = vpop.f32.mrb[0].mxu0
        %1143 = vmatprep.mubr.f32.mxu0 0.0
        %1144 = vmatmul.mubr.f32.gmra.mrb[0].mxu0 %v1031
        %v1145 = vpop.f32.mrb[0].mxu0
        %v1146 = vadd.f32 0.0, %v1145
        %v1147 = vpop.f32.mrb[0].mxu0
        %1148 = vmatprep.mubr.f32.mxu0 0.0
        %1149 = vmatmul.mubr.f32.gmra.mrb[0].mxu0 %v1032
        %v1150 = vpop.f32.mrb[0].mxu0
        %v1151 = vadd.f32 0.0, %v1150
        %v1152 = vpop.f32.mrb[0].mxu0
        %1153 = vmatprep.mubr.f32.mxu0 0.0
        %1154 = vmatmul.mubr.f32.gmra.mrb[0].mxu0 %v1033
        %v1155 = vpop.f32.mrb[0].mxu0
        %v1156 = vadd.f32 0.0, %v1155
        %v1157 = vpop.f32.mrb[0].mxu0
        %1158 = vmatprep.mubr.f32.mxu0 0.0
        %1159 = vmatmul.mubr.f32.gmra.mrb[0].mxu0 %v1034
        %v1160 = vpop.f32.mrb[0].mxu0
        %v1161 = vadd.f32 0.0, %v1160
        %v1162 = vpop.f32.mrb[0].mxu0
        %1163 = vmatprep.mubr.f32.mxu0 0.0
        %1164 = vmatmul.mubr.f32.gmra.mrb[0].mxu0 %v1035
        %v1165 = vpop.f32.mrb[0].mxu0
        %v1166 = vadd.f32 0.0, %v1165
        %v1167 = vpop.f32.mrb[0].mxu0
        %1168 = vmatprep.mubr.f32.mxu0 0.0
        %1169 = vmatmul.mubr.f32.gmra.mrb[0].mxu0 %v1036
        %v1170 = vpop.f32.mrb[0].mxu0
        %v1171 = vadd.f32 0.0, %v1170
        %v1172 = vpop.f32.mrb[0].mxu0
        %1173 = vmatprep.mubr.f32.mxu0 0.0
        %1174 = vmatmul.mubr.f32.gmra.mrb[0].mxu0 %v1037
        %v1175 = vpop.f32.mrb[0].mxu0
        %v1176 = vadd.f32 0.0, %v1175
        %v1177 = vpop.f32.mrb[0].mxu0
        %1178 = vmatprep.mubr.f32.mxu0 0.0
        %1179 = vmatmul.mubr.f32.gmra.mrb[0].mxu0 %v1038
        %v1180 = vpop.f32.mrb[0].mxu0
        %v1181 = vadd.f32 0.0, %v1180
        %v1182 = vpop.f32.mrb[0].mxu0
        %1183 = vmatprep.mubr.f32.mxu0 0.0
        %1184 = vmatmul.mubr.f32.gmra.mrb[0].mxu0 %v1039
        %v1185 = vpop.f32.mrb[0].mxu0
        %v1186 = vadd.f32 0.0, %v1185
        %v1187 = vpop.f32.mrb[0].mxu0
        %1188 = vmatprep.mubr.f32.mxu0 0.0
        %1189 = vmatmul.mubr.f32.gmra.mrb[0].mxu0 %v1040
        %v1190 = vpop.f32.mrb[0].mxu0
        %v1191 = vadd.f32 0.0, %v1190
        %v1192 = vpop.f32.mrb[0].mxu0
        %1193 = vmatprep.mubr.f32.mxu0 0.0
        %1194 = vmatmul.mubr.f32.gmra.mrb[0].mxu0 %v1041
        %v1195 = vpop.f32.mrb[0].mxu0
        %v1196 = vadd.f32 0.0, %v1195
        %v1197 = vpop.f32.mrb[0].mxu0
        %1198 = vmatprep.mubr.f32.mxu0 0.0
        %1199 = vmatmul.mubr.f32.gmra.mrb[0].mxu0 %v1042
        %v1200 = vpop.f32.mrb[0].mxu0
        %v1201 = vadd.f32 0.0, %v1200
        %v1202 = vpop.f32.mrb[0].mxu0
        %1203 = vdwg.mxu0
        %1204 = vmatprep.subr.mxu0 0.0
        %1205 = vmatpush1.msra.mxu0 %v259
        %1206 = vmatprep.subr.mxu0 0.0
        %1207 = vmatpush1.msra.mxu0 %v260
        %1208 = vmatprep.subr.mxu0 0.0
        %1209 = vmatpush1.msra.mxu0 %v261
        %1210 = vmatprep.subr.mxu0 0.0
        %1211 = vmatpush1.msra.mxu0 %v262
        %1212 = vmatprep.subr.mxu0 0.0
        %1213 = vmatpush1.msra.mxu0 %v263
        %1214 = vmatprep.subr.mxu0 0.0
        %1215 = vmatpush1.msra.mxu0 %v264
        %1216 = vmatprep.subr.mxu0 0.0
        %1217 = vmatpush1.msra.mxu0 %v265
        %1218 = vmatprep.subr.mxu0 0.0
        %1219 = vmatpush1.msra.mxu0 %v266
        %1220 = vmatprep.subr.mxu0 0.0
        %1221 = vmatpush1.msra.mxu0 %v267
        %1222 = vmatprep.subr.mxu0 0.0
        %1223 = vmatpush1.msra.mxu0 %v268
        %1224 = vmatprep.subr.mxu0 0.0
        %1225 = vmatpush1.msra.mxu0 %v269
        %1226 = vmatprep.subr.mxu0 0.0
        %1227 = vmatpush1.msra.mxu0 %v270
        %1228 = vmatprep.subr.mxu0 0.0
        %1229 = vmatpush1.msra.mxu0 %v271
        %1230 = vmatprep.subr.mxu0 0.0
        %1231 = vmatpush1.msra.mxu0 %v272
        %1232 = vmatprep.subr.mxu0 0.0
        %1233 = vmatpush1.msra.mxu0 %v273
        %1234 = vmatprep.subr.mxu0 0.0
        %1235 = vmatpush1.msra.mxu0 %v274
        %1236 = vmatprep.subr.mxu0 0.0
        %1237 = vmatpush1.msra.mxu0 0.0
        %1238 = vmatprep.subr.mxu0 0.0
        %1239 = vmatpush1.msra.mxu0 0.0
        %1240 = vmatprep.subr.mxu0 0.0
        %1241 = vmatpush1.msra.mxu0 0.0
        %1242 = vmatprep.subr.mxu0 0.0
        %1243 = vmatpush1.msra.mxu0 0.0
        %1244 = vmatprep.subr.mxu0 0.0
        %1245 = vmatpush1.msra.mxu0 0.0
        %1246 = vmatprep.subr.mxu0 0.0
        %1247 = vmatpush1.msra.mxu0 0.0
        %1248 = vmatprep.subr.mxu0 0.0
        %1249 = vmatpush1.msra.mxu0 0.0
        %1250 = vmatprep.subr.mxu0 0.0
        %1251 = vmatpush1.msra.mxu0 0.0
        %1252 = vmatprep.subr.mxu0 0.0
        %1253 = vmatpush1.msra.mxu0 0.0
        %1254 = vmatprep.subr.mxu0 0.0
        %1255 = vmatpush1.msra.mxu0 0.0
        %1256 = vmatprep.subr.mxu0 0.0
        %1257 = vmatpush1.msra.mxu0 0.0
        %1258 = vmatprep.subr.mxu0 0.0
        %1259 = vmatpush1.msra.mxu0 0.0
        %1260 = vmatprep.subr.mxu0 0.0
        %1261 = vmatpush1.msra.mxu0 0.0
        %1262 = vmatprep.subr.mxu0 0.0
        %1263 = vmatpush1.msra.mxu0 0.0
        %1264 = vmatprep.subr.mxu0 0.0
        %1265 = vmatpush1.msra.mxu0 0.0
        %1266 = vmatprep.subr.mxu0 0.0
        %1267 = vmatpush1.msra.mxu0 0.0
        %1268 = vmatprep.mubr.f32.mxu0 0.0
        %1269 = vmatmul.mubr.f32.gmra.mrb[0].mxu0 %v243
        %v1270 = vpop.f32.mrb[0].mxu0
        %v1271 = vadd.f32 %v1126, %v1270
        %v1272 = vpop.f32.mrb[0].mxu0
        %1273 = vmatprep.mubr.f32.mxu0 0.0
        %1274 = vmatmul.mubr.f32.gmra.mrb[0].mxu0 %v244
        %v1275 = vpop.f32.mrb[0].mxu0
        %v1276 = vadd.f32 %v1131, %v1275
        %v1277 = vpop.f32.mrb[0].mxu0
        %1278 = vmatprep.mubr.f32.mxu0 0.0
        %1279 = vmatmul.mubr.f32.gmra.mrb[0].mxu0 %v245
        %v1280 = vpop.f32.mrb[0].mxu0
        %v1281 = vadd.f32 %v1136, %v1280
        %v1282 = vpop.f32.mrb[0].mxu0
        %1283 = vmatprep.mubr.f32.mxu0 0.0
        %1284 = vmatmul.mubr.f32.gmra.mrb[0].mxu0 %v246
        %v1285 = vpop.f32.mrb[0].mxu0
        %v1286 = vadd.f32 %v1141, %v1285
        %v1287 = vpop.f32.mrb[0].mxu0
        %1288 = vmatprep.mubr.f32.mxu0 0.0
        %1289 = vmatmul.mubr.f32.gmra.mrb[0].mxu0 %v247
        %v1290 = vpop.f32.mrb[0].mxu0
        %v1291 = vadd.f32 %v1146, %v1290
        %v1292 = vpop.f32.mrb[0].mxu0
        %1293 = vmatprep.mubr.f32.mxu0 0.0
        %1294 = vmatmul.mubr.f32.gmra.mrb[0].mxu0 %v248
        %v1295 = vpop.f32.mrb[0].mxu0
        %v1296 = vadd.f32 %v1151, %v1295
        %v1297 = vpop.f32.mrb[0].mxu0
        %1298 = vmatprep.mubr.f32.mxu0 0.0
        %1299 = vmatmul.mubr.f32.gmra.mrb[0].mxu0 %v249
        %v1300 = vpop.f32.mrb[0].mxu0
        %v1301 = vadd.f32 %v1156, %v1300
        %v1302 = vpop.f32.mrb[0].mxu0
        %1303 = vmatprep.mubr.f32.mxu0 0.0
        %1304 = vmatmul.mubr.f32.gmra.mrb[0].mxu0 %v250
        %v1305 = vpop.f32.mrb[0].mxu0
        %v1306 = vadd.f32 %v1161, %v1305
        %v1307 = vpop.f32.mrb[0].mxu0
        %1308 = vmatprep.mubr.f32.mxu0 0.0
        %1309 = vmatmul.mubr.f32.gmra.mrb[0].mxu0 %v251
        %v1310 = vpop.f32.mrb[0].mxu0
        %v1311 = vadd.f32 %v1166, %v1310
        %v1312 = vpop.f32.mrb[0].mxu0
        %1313 = vmatprep.mubr.f32.mxu0 0.0
        %1314 = vmatmul.mubr.f32.gmra.mrb[0].mxu0 %v252
        %v1315 = vpop.f32.mrb[0].mxu0
        %v1316 = vadd.f32 %v1171, %v1315
        %v1317 = vpop.f32.mrb[0].mxu0
        %1318 = vmatprep.mubr.f32.mxu0 0.0
        %1319 = vmatmul.mubr.f32.gmra.mrb[0].mxu0 %v253
        %v1320 = vpop.f32.mrb[0].mxu0
        %v1321 = vadd.f32 %v1176, %v1320
        %v1322 = vpop.f32.mrb[0].mxu0
        %1323 = vmatprep.mubr.f32.mxu0 0.0
        %1324 = vmatmul.mubr.f32.gmra.mrb[0].mxu0 %v254
        %v1325 = vpop.f32.mrb[0].mxu0
        %v1326 = vadd.f32 %v1181, %v1325
        %v1327 = vpop.f32.mrb[0].mxu0
        %1328 = vmatprep.mubr.f32.mxu0 0.0
        %1329 = vmatmul.mubr.f32.gmra.mrb[0].mxu0 %v255
        %v1330 = vpop.f32.mrb[0].mxu0
        %v1331 = vadd.f32 %v1186, %v1330
        %v1332 = vpop.f32.mrb[0].mxu0
        %1333 = vmatprep.mubr.f32.mxu0 0.0
        %1334 = vmatmul.mubr.f32.gmra.mrb[0].mxu0 %v256
        %v1335 = vpop.f32.mrb[0].mxu0
        %v1336 = vadd.f32 %v1191, %v1335
        %v1337 = vpop.f32.mrb[0].mxu0
        %1338 = vmatprep.mubr.f32.mxu0 0.0
        %1339 = vmatmul.mubr.f32.gmra.mrb[0].mxu0 %v257
        %v1340 = vpop.f32.mrb[0].mxu0
        %v1341 = vadd.f32 %v1196, %v1340
        %v1342 = vpop.f32.mrb[0].mxu0
        %1343 = vmatprep.mubr.f32.mxu0 0.0
        %1344 = vmatmul.mubr.f32.gmra.mrb[0].mxu0 %v258
        %v1345 = vpop.f32.mrb[0].mxu0
        %v1346 = vadd.f32 %v1201, %v1345
        %v1347 = vpop.f32.mrb[0].mxu0
        %1348 = vdwg.mxu0
        %1349 = vst [vmem:[%s137] sm:$0xff] %v1271
        %1350 = vst [vmem:[%s137 + $0x8] sm:$0xff] %v1276
        %1351 = vst [vmem:[%s137 + $0x10] sm:$0xff] %v1281
        %1352 = vst [vmem:[%s137 + $0x18] sm:$0xff] %v1286
        %1353 = vst [vmem:[%s137 + $0x20] sm:$0xff] %v1291
        %1354 = vst [vmem:[%s137 + $0x28] sm:$0xff] %v1296
        %1355 = vst [vmem:[%s137 + $0x30] sm:$0xff] %v1301
        %1356 = vst [vmem:[%s137 + $0x38] sm:$0xff] %v1306
        %1357 = vst [vmem:[%s137 + $0x40] sm:$0xff] %v1311
        %1358 = vst [vmem:[%s137 + $0x48] sm:$0xff] %v1316
        %1359 = vst [vmem:[%s137 + $0x50] sm:$0xff] %v1321
        %1360 = vst [vmem:[%s137 + $0x58] sm:$0xff] %v1326
        %1361 = vst [vmem:[%s137 + $0x60] sm:$0xff] %v1331
        %1362 = vst [vmem:[%s137 + $0x68] sm:$0xff] %v1336
        %1363 = vst [vmem:[%s137 + $0x70] sm:$0xff] %v1341
        %1364 = vst [vmem:[%s137 + $0x78] sm:$0xff] %v1346
        %s1365 = sand.u32 %s71, 1
        %s1366 = scalar_lea.sflag [#allocation3], %s1365
        %s1367 = sand.u32 %s71, 1
        %s1368 = smul.addr %s1367, 128
        %s1369 = scalar_lea.vmem [#allocation2], %s1368
        // Predicated region
        $region29: #{tpu_custom_call.1} parent=27 // pred_check
          %p1370 = pneg %p81
        $region30: #{tpu_custom_call.1} parent=27 // pred_check_branch
          %1372 = sbr.rel (%p1370) target = $region32
        $region31: #{tpu_custom_call.1} parent=27 // pred_region
          %s1373 = smul.u32 16, %s16
          %s1375 = ssub.s32 2048, 2048
          %1376 = vsyncadd %s1366, %s1375
          %s1377 = smul.addr %s1373, 128
          %s1378 = scalar_lea.hbm %s2, %s1377
          %s1379 = sshll.u32 %s1369, 4
          %s1380 = int_to_ptr.vmem [resolvable:$true] %s1379
          %1385 = dma.vmem_to_hbm [thread:$0]  %s1380, 2048, %s1378, %s1366, 128, 128, 8
        $region32: #{tpu_custom_call.1} parent=27 // pred_fallthru
          _
      $region28: #{tpu_custom_call.1} parent=5 // pred_fallthru
        _
      %p1386 = scmp.le.s32.totalorder 2, %s11
      // Predicated region
      $region33: #{tpu_custom_call.1} parent=5 // pred_check
        %p1387 = pneg %p1386
      $region34: #{tpu_custom_call.1} parent=5 // pred_check_branch
        %1389 = sbr.rel (%p1387) target = $region36
      $region35: #{tpu_custom_call.1} parent=5 // pred_region
        %s1390 = ssub.s32 %s11, 2
        // Predicated region
        $region37: #{tpu_custom_call.1} parent=35 // pred_check
          %p1391 = pneg %p87
        $region38: #{tpu_custom_call.1} parent=35 // pred_check_branch
          %1393 = sbr.rel (%p1391) target = $region40
        $region39: #{tpu_custom_call.1} parent=35 // pred_region
          %s1394 = sand.u32 %s72, 1
          %s1395 = scalar_lea.sflag [#allocation3], %s1394
          %s1396 = sand.u32 %s72, 1
          %s1397 = smul.addr %s1396, 128
          %s1398 = scalar_lea.vmem [#allocation2], %s1397
          %1399 = dma.done %s1395, 2048
        $region40: #{tpu_custom_call.1} parent=35 // pred_fallthru
          _
      $region36: #{tpu_custom_call.1} parent=5 // pred_fallthru
        _
    $region6: #{tpu_custom_call.1} parent=1 // loop_footer
      %s15 = sadd.s32 1, %s11
    $region7: #{tpu_custom_call.1} parent=1 // loop_footer_branch
      %10 = sbr.rel target = $region3
    $region8: #{tpu_custom_call.1} parent=1 // loop_exit
      _
    %1400 = vsyncpa [#allocation3], 1
    %s1401 = scalar_lea.sflag [#allocation3], 1
    %1402 = vsyncpa %s1401, 1

</llo_original>
